<compile_context>
chip_gen: v6e
topology: v6e:2x2x1
jax: 0.10.0
libtpu: 0.0.40
codegen_flags: <defaults>
</compile_context>

<pallas_src>
import jax
import jax.numpy as jnp
from jax.experimental import pallas as pl
from jax.experimental.pallas import tpu as pltpu


def _round_up(v, m):
    return ((v + m - 1) // m) * m


def _pad2d(a, rows, cols):
    r, c = a.shape
    return jnp.pad(a, ((0, rows - r), (0, cols - c)))


def node_block_kernel(off_ref, cnt_ref,                          # scalar prefetch (SMEM)
                      recv_ref, x_ref, e_ref,                    # tiled inputs
                      w1x_ref, w1a_ref, b1_ref, w2_ref, b2_ref,  # resident MLP params
                      out_ref,                                   # tiled output
                      agg_ref, nid_ref):                         # VMEM scratch
    ni = pl.program_id(0)                  # node-tile index       (parallel)
    ei = pl.program_id(1)                  # local edge-tile index (reduction, last)
    n_edge_steps = pl.num_programs(1)
    Tn = agg_ref.shape[0]

    # ---- init accumulator + node-id column once per node tile ----
    @pl.when(ei == 0)
    def _():
        agg_ref[...] = jnp.zeros_like(agg_ref)
        nid_ref[...] = ni * Tn + jax.lax.broadcasted_iota(jnp.int32, nid_ref.shape, 0)

    # ---- scatter-add this edge tile; skip clamped (past-the-range) steps ----
    @pl.when(ei < cnt_ref[ni])
    def _():
        # (Tn, Te) one-hot: node-id column (sublanes) vs lane-dense receiver row.
        onehot = (nid_ref[...] == recv_ref[...]).astype(e_ref.dtype)
        # agg[n, f] += sum_e onehot[n, e] * edge[e, f]   (MXU, f32 accumulate)
        agg_ref[...] += jnp.dot(onehot, e_ref[...],
                                preferred_element_type=jnp.float32)

    # ---- finalize: 2-layer MLP on concat([x, agg]) + residual, store once ----
    @pl.when(ei == n_edge_steps - 1)
    def _():
        mmd = w1x_ref.dtype                       # bf16 (fast path) or f32
        x32 = x_ref[...].astype(jnp.float32)
        h1 = (jnp.dot(x32.astype(mmd), w1x_ref[...],
                      preferred_element_type=jnp.float32)
              + jnp.dot(agg_ref[...].astype(mmd), w1a_ref[...],
                        preferred_element_type=jnp.float32)
              + b1_ref[...])
        h1 = jnp.maximum(h1, 0.0)                 # ReLU
        out = (jnp.dot(h1.astype(mmd), w2_ref[...],
                       preferred_element_type=jnp.float32)
               + b2_ref[...])
        out_ref[...] = (x32 + out).astype(out_ref.dtype)


def node_block_pallas(x, edge_attr, edge_index, params, *,
                      tn=256, te=1024, use_bf16=True,
                      vmem_limit_bytes=48 * 1024 * 1024):
    """x: [N, Dn], edge_attr: [E, De], edge_attr dtype f32, edge_index: [2, E] int.

    Call with concrete (non-traced) edge_index: the grid's edge axis is sized
    from the max edge-tiles any node tile needs, computed on the host.
    """
    N, Dn = x.shape
    E, De = edge_attr.shape
    H = params["w1x"].shape[1]

    # Lane-dense feature padding (multiples of 128).
    Dn_p = _round_up(Dn, 128)
    De_p = _round_up(De, 128)
    H_p = _round_up(H, 128)

    # Row tiles.  The lane-dense (1, Te) receiver block needs Te % 128 == 0
    # unless a single edge tile covers everything (block == full array dim).
    if N <= tn:
        Tn = _round_up(N, 8)
        N_p = Tn
    else:
        Tn = _round_up(tn, 8)
        N_p = _round_up(N, Tn)
    if E <= te:
        Te = _round_up(E, 8)
        E_p = Te
    else:
        Te = _round_up(te, 128)
        E_p = _round_up(E, Te)
    n_node_tiles = N_p // Tn
    n_edge_tiles = E_p // Te

    mm_dtype = jnp.bfloat16 if use_bf16 else jnp.float32

    # ---- sort edges by receiver so each node tile owns a contiguous range ----
    recv = edge_index[1].astype(jnp.int32)
    order = jnp.argsort(recv)
    recv_sorted = recv[order]
    e_sorted = edge_attr[order].astype(mm_dtype)       # bf16 -> half-width HBM stream

    recv_p = jnp.pad(recv_sorted, (0, E_p - E), constant_values=-1).reshape(1, E_p)
    e_p = _pad2d(e_sorted, E_p, De_p)
    x_p = _pad2d(x, N_p, Dn_p)

    # Per-node-tile edge-tile start / count (scalar-prefetched to SMEM).
    bounds = jnp.arange(n_node_tiles + 1, dtype=jnp.int32) * Tn
    pos = jnp.searchsorted(recv_sorted, bounds, side="left").astype(jnp.int32)
    edge_lo, edge_hi = pos[:-1], pos[1:]
    off_raw = edge_lo // Te
    tile_end = (edge_hi + Te - 1) // Te
    tile_cnt = jnp.where(edge_hi > edge_lo, tile_end - off_raw, 0).astype(jnp.int32)
    tile_off = jnp.minimum(off_raw, n_edge_tiles - 1).astype(jnp.int32)
    # Grid edge axis = max edge tiles any node tile needs (host concretization).
    max_edge_steps = max(int(jnp.max(jnp.maximum(tile_cnt, 1))), 1)

    w1x_p = _pad2d(params["w1x"], Dn_p, H_p).astype(mm_dtype)
    w1a_p = _pad2d(params["w1a"], De_p, H_p).astype(mm_dtype)
    w2_p = _pad2d(params["w2"], H_p, Dn_p).astype(mm_dtype)
    b1_p = _pad2d(params["b1"], 1, H_p).astype(jnp.float32)
    b2_p = _pad2d(params["b2"], 1, Dn_p).astype(jnp.float32)

    def edge_map(ni, ei, off_ref, cnt_ref):
        last = jnp.maximum(cnt_ref[ni], 1) - 1
        return (off_ref[ni] + jnp.minimum(ei, last), 0)

    def recv_map(ni, ei, off_ref, cnt_ref):
        last = jnp.maximum(cnt_ref[ni], 1) - 1
        return (0, off_ref[ni] + jnp.minimum(ei, last))

    grid_spec = pltpu.PrefetchScalarGridSpec(
        num_scalar_prefetch=2,
        grid=(n_node_tiles, max_edge_steps),
        in_specs=[
            pl.BlockSpec((1, Te),     recv_map),                    # receivers (lane-dense row)
            pl.BlockSpec((Tn, Dn_p),  lambda ni, ei, *_: (ni, 0)),  # x (node-tiled)
            pl.BlockSpec((Te, De_p),  edge_map),                    # edge_attr (edge-range tiled)
            # Resident MLP params (constant index_maps -> DMA'd once).
            # pipeline_mode=pl.Buffered(1) would single-buffer them (halves their
            # VMEM on v7x); left at the default for portability.
            pl.BlockSpec((Dn_p, H_p), lambda ni, ei, *_: (0, 0)),   # w1x
            pl.BlockSpec((De_p, H_p), lambda ni, ei, *_: (0, 0)),   # w1a
            pl.BlockSpec((1, H_p),    lambda ni, ei, *_: (0, 0)),   # b1
            pl.BlockSpec((H_p, Dn_p), lambda ni, ei, *_: (0, 0)),   # w2
            pl.BlockSpec((1, Dn_p),   lambda ni, ei, *_: (0, 0)),   # b2
        ],
        out_specs=pl.BlockSpec((Tn, Dn_p), lambda ni, ei, *_: (ni, 0)),
        scratch_shapes=[pltpu.VMEM((Tn, De_p), jnp.float32),   # agg accumulator
                        pltpu.VMEM((Tn, 1), jnp.int32)],       # node-id column
    )

    e_item = 2 if use_bf16 else 4
    tiles_streamed = int(jnp.sum(jnp.maximum(tile_cnt, 1)))
    flops = (2 * tiles_streamed * Te * Tn * De_p          # scatter matmuls
             + 2 * N_p * (Dn_p + De_p) * H_p              # first Linear
             + 2 * N_p * H_p * Dn_p)                      # second Linear
    bytes_accessed = (tiles_streamed * Te * (De_p * e_item + 4)   # edge stream + receivers
                      + 2 * N_p * Dn_p * 4                        # x in + out
                      + (Dn_p + De_p + Dn_p) * H_p * e_item       # weights
                      + (H_p + Dn_p) * 4)                         # biases

    out_p = pl.pallas_call(
        node_block_kernel,
        out_shape=jax.ShapeDtypeStruct((N_p, Dn_p), x.dtype),
        grid_spec=grid_spec,
        compiler_params=pltpu.CompilerParams(
            # On v7x also consider pltpu.CORE_PARALLEL on the node axis to force
            # the 2-TensorCore split; on v5e/v6e (128 MiB VMEM) the limit can be
            # raised to ~96 MiB to allow even larger Te/Tn.
            dimension_semantics=("parallel", "arbitrary"),
            vmem_limit_bytes=vmem_limit_bytes,
        ),
        cost_estimate=pl.CostEstimate(
            flops=flops, transcendentals=0, bytes_accessed=bytes_accessed),
    )(tile_off, tile_cnt, recv_p, x_p, e_p, w1x_p, w1a_p, b1_p, w2_p, b2_p)

    x_new = out_p[:N, :Dn]
    return x_new, edge_attr, edge_index


def node_block_reference(x, edge_attr, edge_index, params):
    """Pure-JAX reference matching the PyTorch forward."""
    N = x.shape[0]
    receivers = edge_index[1]
    agg = jax.ops.segment_sum(edge_attr, receivers, num_segments=N)
    h = jnp.concatenate([x, agg], axis=-1)
    w1 = jnp.concatenate([params["w1x"], params["w1a"]], axis=0)
    h1 = jnp.maximum(h @ w1 + params["b1"], 0.0)
    return x + (h1 @ params["w2"] + params["b2"])


if __name__ == "__main__":
    key = jax.random.PRNGKey(0)
    k_x, k_e, k_idx, k_w1, k_w2, k_b1, k_b2 = jax.random.split(key, 7)

    # Small synthetic graph: 24 nodes, 300 edges, node_dim=8, edge_dim=12, hidden=32.
    # Tiny tiles (tn=16, te=128) force multiple node tiles AND multiple edge
    # tiles per node tile, so init / accumulate / finalize / data-dependent
    # edge-range paths all execute even at this small size.
    N, E, Dn, De, H = 24, 300, 8, 12, 32

    x = jax.random.normal(k_x, (N, Dn), dtype=jnp.float32)
    edge_attr = jax.random.normal(k_e, (E, De), dtype=jnp.float32)
    edge_index = jax.random.randint(k_idx, (2, E), 0, N, dtype=jnp.int32)

    # MLP params for `self.net` (Linear(Dn+De,H)-ReLU-Linear(H,Dn)), W1 split
    # into the x-part and agg-part so the concat is folded into the matmuls.
    w1 = jax.random.normal(k_w1, (Dn + De, H), dtype=jnp.float32) * 0.1
    params = {
        "w1x": w1[:Dn],                  # [Dn, H]
        "w1a": w1[Dn:],                  # [De, H]
        "b1": jax.random.normal(k_b1, (1, H), dtype=jnp.float32) * 0.1,
        "w2": jax.random.normal(k_w2, (H, Dn), dtype=jnp.float32) * 0.1,
        "b2": jax.random.normal(k_b2, (1, Dn), dtype=jnp.float32) * 0.1,
    }

    ref = node_block_reference(x, edge_attr, edge_index, params)

    # Exact f32 path: tight tolerance vs reference.
    x_f32, e_out, ei_out = node_block_pallas(x, edge_attr, edge_index, params,
                                             tn=16, te=128, use_bf16=False)
    jax.block_until_ready(x_f32)
    assert jnp.allclose(x_f32, ref, atol=1e-4, rtol=1e-4), "f32 mismatch vs reference"

    # Default fast path (bf16 scatter / weights, f32 accumulation): looser tolerance.
    x_bf16, _, _ = node_block_pallas(x, edge_attr, edge_index, params,
                                     tn=16, te=128)
    jax.block_until_ready(x_bf16)
    assert jnp.allclose(x_bf16, ref, atol=1e-1, rtol=1e-1), "bf16 mismatch vs reference"

    assert jnp.array_equal(e_out, edge_attr) and jnp.array_equal(ei_out, edge_index)

    print("KERNEL_OK")
</pallas_src>

<mosaic_0001>
module attributes {stable_mosaic.version = 11 : i64} {
  func.func @node_block_kernel(%arg0: i32, %arg1: i32, %arg2: memref<2xi32, #tpu.memory_space<smem>>, %arg3: memref<2xi32, #tpu.memory_space<smem>>, %arg4: memref<1x128xi32, #tpu.memory_space<vmem>>, %arg5: memref<16x128xf32, #tpu.memory_space<vmem>>, %arg6: memref<128x128xf32, #tpu.memory_space<vmem>>, %arg7: memref<128x128xf32, #tpu.memory_space<vmem>>, %arg8: memref<128x128xf32, #tpu.memory_space<vmem>>, %arg9: memref<1x128xf32, #tpu.memory_space<vmem>>, %arg10: memref<128x128xf32, #tpu.memory_space<vmem>>, %arg11: memref<1x128xf32, #tpu.memory_space<vmem>>, %arg12: memref<16x128xf32, #tpu.memory_space<vmem>>, %arg13: memref<16x128xf32, #tpu.memory_space<vmem>>, %arg14: memref<16x1xi32, #tpu.memory_space<vmem>>) attributes {dimension_semantics = [#tpu.dimension_semantics<parallel>, #tpu.dimension_semantics<arbitrary>], iteration_bounds = array<i64: 2, 2>, scalar_prefetch = 2 : i64, scratch_operands = 2 : i64, tpu.core_type = #tpu.core_type<tc>, window_params = [{transform_indices = @transform_0, window_bounds = array<i64: 1, 128>}, {transform_indices = @transform_1, window_bounds = array<i64: 16, 128>}, {transform_indices = @transform_2, window_bounds = array<i64: 128, 128>}, {pipeline_mode = #tpu.pipeline_mode<synchronous>, transform_indices = @transform_3, window_bounds = array<i64: 128, 128>}, {pipeline_mode = #tpu.pipeline_mode<synchronous>, transform_indices = @transform_4, window_bounds = array<i64: 128, 128>}, {pipeline_mode = #tpu.pipeline_mode<synchronous>, transform_indices = @transform_5, window_bounds = array<i64: 1, 128>}, {pipeline_mode = #tpu.pipeline_mode<synchronous>, transform_indices = @transform_6, window_bounds = array<i64: 128, 128>}, {pipeline_mode = #tpu.pipeline_mode<synchronous>, transform_indices = @transform_7, window_bounds = array<i64: 1, 128>}, {transform_indices = @transform_8, window_bounds = array<i64: 16, 128>}]} {
    %c0_i32 = arith.constant 0 : i32
    %0 = arith.cmpi eq, %arg1, %c0_i32 : i32
    %1 = arith.extui %0 : i1 to i32
    %c0_i32_0 = arith.constant 0 : i32
    %2 = arith.cmpi ne, %1, %c0_i32_0 : i32
    scf.if %2 {
      %cst = arith.constant 0.000000e+00 : f32
      %11 = vector.broadcast %cst : f32 to vector<16x128xf32>
      %c0 = arith.constant 0 : index
      %c0_3 = arith.constant 0 : index
      %12 = vector.load %arg13[%c0, %c0_3] : memref<16x128xf32, #tpu.memory_space<vmem>>, vector<16x128xf32>
      tpu.vector_store %arg13[%c0, %c0_3], %11 {strides = array<i32>} : memref<16x128xf32, #tpu.memory_space<vmem>>, vector<16x128xf32>,
      %c16_i32 = arith.constant 16 : i32
      %13 = arith.muli %arg0, %c16_i32 : i32
      %14 = tpu.iota {dimensions = array<i32: 0>} : vector<16x1xi32>
      %15 = vector.broadcast %13 : i32 to vector<16x1xi32>
      %16 = arith.addi %15, %14 : vector<16x1xi32>
      %c0_4 = arith.constant 0 : index
      %c0_5 = arith.constant 0 : index
      %17 = vector.load %arg14[%c0_4, %c0_5] : memref<16x1xi32, #tpu.memory_space<vmem>>, vector<16x1xi32>
      tpu.vector_store %arg14[%c0_4, %c0_5], %16 {strides = array<i32>} : memref<16x1xi32, #tpu.memory_space<vmem>>, vector<16x1xi32>,
    } else {
    }
    %3 = arith.index_cast %arg0 : i32 to index
    %4 = memref.load %arg3[%3] : memref<2xi32, #tpu.memory_space<smem>>
    %5 = arith.cmpi slt, %arg1, %4 : i32
    %6 = arith.extui %5 : i1 to i32
    %c0_i32_1 = arith.constant 0 : i32
    %7 = arith.cmpi ne, %6, %c0_i32_1 : i32
    scf.if %7 {
      %c0 = arith.constant 0 : index
      %c0_3 = arith.constant 0 : index
      %11 = vector.load %arg14[%c0, %c0_3] : memref<16x1xi32, #tpu.memory_space<vmem>>, vector<16x1xi32>
      %c0_4 = arith.constant 0 : index
      %c0_5 = arith.constant 0 : index
      %12 = vector.load %arg4[%c0_4, %c0_5] : memref<1x128xi32, #tpu.memory_space<vmem>>, vector<1x128xi32>
      %13 = vector.broadcast %11 : vector<16x1xi32> to vector<16x128xi32>
      %14 = vector.broadcast %12 : vector<1x128xi32> to vector<16x128xi32>
      %15 = arith.cmpi eq, %13, %14 : vector<16x128xi32>
      %16 = arith.extui %15 : vector<16x128xi1> to vector<16x128xi32>
      %17 = arith.sitofp %16 : vector<16x128xi32> to vector<16x128xf32>
      %c0_6 = arith.constant 0 : index
      %c0_7 = arith.constant 0 : index
      %18 = vector.load %arg13[%c0_6, %c0_7] : memref<16x128xf32, #tpu.memory_space<vmem>>, vector<16x128xf32>
      %c0_8 = arith.constant 0 : index
      %c0_9 = arith.constant 0 : index
      %19 = vector.load %arg6[%c0_8, %c0_9] : memref<128x128xf32, #tpu.memory_space<vmem>>, vector<128x128xf32>
      %cst = arith.constant dense<0.000000e+00> : vector<16x128xf32>
      %20 = tpu.matmul %17, %19, %cst {dimension_numbers = #tpu.dot_dimension_numbers<[1], [0], [0], [1], [0, 0, 1, 1], [], []>} : vector<16x128xf32>, vector<128x128xf32>, vector<16x128xf32> -> vector<16x128xf32>
      %21 = arith.addf %18, %20 : vector<16x128xf32>
      %c0_10 = arith.constant 0 : index
      %c0_11 = arith.constant 0 : index
      %22 = vector.load %arg13[%c0_10, %c0_11] : memref<16x128xf32, #tpu.memory_space<vmem>>, vector<16x128xf32>
      tpu.vector_store %arg13[%c0_10, %c0_11], %21 {strides = array<i32>} : memref<16x128xf32, #tpu.memory_space<vmem>>, vector<16x128xf32>,
    } else {
    }
    %c1_i32 = arith.constant 1 : i32
    %8 = arith.cmpi eq, %arg1, %c1_i32 : i32
    %9 = arith.extui %8 : i1 to i32
    %c0_i32_2 = arith.constant 0 : i32
    %10 = arith.cmpi ne, %9, %c0_i32_2 : i32
    scf.if %10 {
      %c0 = arith.constant 0 : index
      %c0_3 = arith.constant 0 : index
      %11 = vector.load %arg5[%c0, %c0_3] : memref<16x128xf32, #tpu.memory_space<vmem>>, vector<16x128xf32>
      %c0_4 = arith.constant 0 : index
      %c0_5 = arith.constant 0 : index
      %12 = vector.load %arg7[%c0_4, %c0_5] : memref<128x128xf32, #tpu.memory_space<vmem>>, vector<128x128xf32>
      %cst = arith.constant dense<0.000000e+00> : vector<16x128xf32>
      %13 = tpu.matmul %11, %12, %cst {dimension_numbers = #tpu.dot_dimension_numbers<[1], [0], [0], [1], [0, 0, 1, 1], [], []>} : vector<16x128xf32>, vector<128x128xf32>, vector<16x128xf32> -> vector<16x128xf32>
      %c0_6 = arith.constant 0 : index
      %c0_7 = arith.constant 0 : index
      %14 = vector.load %arg13[%c0_6, %c0_7] : memref<16x128xf32, #tpu.memory_space<vmem>>, vector<16x128xf32>
      %c0_8 = arith.constant 0 : index
      %c0_9 = arith.constant 0 : index
      %15 = vector.load %arg8[%c0_8, %c0_9] : memref<128x128xf32, #tpu.memory_space<vmem>>, vector<128x128xf32>
      %cst_10 = arith.constant dense<0.000000e+00> : vector<16x128xf32>
      %16 = tpu.matmul %14, %15, %cst_10 {dimension_numbers = #tpu.dot_dimension_numbers<[1], [0], [0], [1], [0, 0, 1, 1], [], []>} : vector<16x128xf32>, vector<128x128xf32>, vector<16x128xf32> -> vector<16x128xf32>
      %17 = arith.addf %13, %16 : vector<16x128xf32>
      %c0_11 = arith.constant 0 : index
      %c0_12 = arith.constant 0 : index
      %18 = vector.load %arg9[%c0_11, %c0_12] : memref<1x128xf32, #tpu.memory_space<vmem>>, vector<1x128xf32>
      %19 = vector.broadcast %18 : vector<1x128xf32> to vector<16x128xf32>
      %20 = arith.addf %17, %19 : vector<16x128xf32>
      %cst_13 = arith.constant 0.000000e+00 : f32
      %21 = vector.broadcast %cst_13 : f32 to vector<16x128xf32>
      %22 = arith.maximumf %20, %21 : vector<16x128xf32>
      %c0_14 = arith.constant 0 : index
      %c0_15 = arith.constant 0 : index
      %23 = vector.load %arg10[%c0_14, %c0_15] : memref<128x128xf32, #tpu.memory_space<vmem>>, vector<128x128xf32>
      %cst_16 = arith.constant dense<0.000000e+00> : vector<16x128xf32>
      %24 = tpu.matmul %22, %23, %cst_16 {dimension_numbers = #tpu.dot_dimension_numbers<[1], [0], [0], [1], [0, 0, 1, 1], [], []>} : vector<16x128xf32>, vector<128x128xf32>, vector<16x128xf32> -> vector<16x128xf32>
      %c0_17 = arith.constant 0 : index
      %c0_18 = arith.constant 0 : index
      %25 = vector.load %arg11[%c0_17, %c0_18] : memref<1x128xf32, #tpu.memory_space<vmem>>, vector<1x128xf32>
      %26 = vector.broadcast %25 : vector<1x128xf32> to vector<16x128xf32>
      %27 = arith.addf %24, %26 : vector<16x128xf32>
      %28 = arith.addf %11, %27 : vector<16x128xf32>
      %c0_19 = arith.constant 0 : index
      %c0_20 = arith.constant 0 : index
      %29 = vector.load %arg12[%c0_19, %c0_20] : memref<16x128xf32, #tpu.memory_space<vmem>>, vector<16x128xf32>
      tpu.vector_store %arg12[%c0_19, %c0_20], %28 {strides = array<i32>} : memref<16x128xf32, #tpu.memory_space<vmem>>, vector<16x128xf32>,
    } else {
    }
    return
  }
  func.func @transform_0(%arg0: i32, %arg1: i32, %arg2: memref<2xi32, #tpu.memory_space<smem>>, %arg3: memref<2xi32, #tpu.memory_space<smem>>) -> (i32, i32) {
    %0 = arith.index_cast %arg0 : i32 to index
    %1 = memref.load %arg3[%0] : memref<2xi32, #tpu.memory_space<smem>>
    %c1_i32 = arith.constant 1 : i32
    %2 = arith.maxsi %1, %c1_i32 : i32
    %c1_i32_0 = arith.constant 1 : i32
    %3 = arith.subi %2, %c1_i32_0 : i32
    %4 = arith.index_cast %arg0 : i32 to index
    %5 = memref.load %arg2[%4] : memref<2xi32, #tpu.memory_space<smem>>
    %6 = arith.minsi %arg1, %3 : i32
    %7 = arith.addi %5, %6 : i32
    %c0_i32 = arith.constant 0 : i32
    %c0_i32_1 = arith.constant 0 : i32
    return %c0_i32, %7 : i32, i32
  }
  func.func @transform_1(%arg0: i32, %arg1: i32, %arg2: memref<2xi32, #tpu.memory_space<smem>>, %arg3: memref<2xi32, #tpu.memory_space<smem>>) -> (i32, i32) {
    %c0_i32 = arith.constant 0 : i32
    %c0_i32_0 = arith.constant 0 : i32
    return %arg0, %c0_i32 : i32, i32
  }
  func.func @transform_2(%arg0: i32, %arg1: i32, %arg2: memref<2xi32, #tpu.memory_space<smem>>, %arg3: memref<2xi32, #tpu.memory_space<smem>>) -> (i32, i32) {
    %0 = arith.index_cast %arg0 : i32 to index
    %1 = memref.load %arg3[%0] : memref<2xi32, #tpu.memory_space<smem>>
    %c1_i32 = arith.constant 1 : i32
    %2 = arith.maxsi %1, %c1_i32 : i32
    %c1_i32_0 = arith.constant 1 : i32
    %3 = arith.subi %2, %c1_i32_0 : i32
    %4 = arith.index_cast %arg0 : i32 to index
    %5 = memref.load %arg2[%4] : memref<2xi32, #tpu.memory_space<smem>>
    %6 = arith.minsi %arg1, %3 : i32
    %7 = arith.addi %5, %6 : i32
    %c0_i32 = arith.constant 0 : i32
    %c0_i32_1 = arith.constant 0 : i32
    return %7, %c0_i32 : i32, i32
  }
  func.func @transform_3(%arg0: i32, %arg1: i32, %arg2: memref<2xi32, #tpu.memory_space<smem>>, %arg3: memref<2xi32, #tpu.memory_space<smem>>) -> (i32, i32) {
    %c0_i32 = arith.constant 0 : i32
    %c0_i32_0 = arith.constant 0 : i32
    %c0_i32_1 = arith.constant 0 : i32
    return %c0_i32, %c0_i32_0 : i32, i32
  }
  func.func @transform_4(%arg0: i32, %arg1: i32, %arg2: memref<2xi32, #tpu.memory_space<smem>>, %arg3: memref<2xi32, #tpu.memory_space<smem>>) -> (i32, i32) {
    %c0_i32 = arith.constant 0 : i32
    %c0_i32_0 = arith.constant 0 : i32
    %c0_i32_1 = arith.constant 0 : i32
    return %c0_i32, %c0_i32_0 : i32, i32
  }
  func.func @transform_5(%arg0: i32, %arg1: i32, %arg2: memref<2xi32, #tpu.memory_space<smem>>, %arg3: memref<2xi32, #tpu.memory_space<smem>>) -> (i32, i32) {
    %c0_i32 = arith.constant 0 : i32
    %c0_i32_0 = arith.constant 0 : i32
    %c0_i32_1 = arith.constant 0 : i32
    return %c0_i32, %c0_i32_0 : i32, i32
  }
  func.func @transform_6(%arg0: i32, %arg1: i32, %arg2: memref<2xi32, #tpu.memory_space<smem>>, %arg3: memref<2xi32, #tpu.memory_space<smem>>) -> (i32, i32) {
    %c0_i32 = arith.constant 0 : i32
    %c0_i32_0 = arith.constant 0 : i32
    %c0_i32_1 = arith.constant 0 : i32
    return %c0_i32, %c0_i32_0 : i32, i32
  }
  func.func @transform_7(%arg0: i32, %arg1: i32, %arg2: memref<2xi32, #tpu.memory_space<smem>>, %arg3: memref<2xi32, #tpu.memory_space<smem>>) -> (i32, i32) {
    %c0_i32 = arith.constant 0 : i32
    %c0_i32_0 = arith.constant 0 : i32
    %c0_i32_1 = arith.constant 0 : i32
    return %c0_i32, %c0_i32_0 : i32, i32
  }
  func.func @transform_8(%arg0: i32, %arg1: i32, %arg2: memref<2xi32, #tpu.memory_space<smem>>, %arg3: memref<2xi32, #tpu.memory_space<smem>>) -> (i32, i32) {
    %c0_i32 = arith.constant 0 : i32
    %c0_i32_0 = arith.constant 0 : i32
    return %arg0, %c0_i32 : i32, i32
  }
}

</mosaic_0001>

<llo_original>
// kernel: tpu_custom_call.1
$region0: #{tpu_custom_call.1}
  #allocation0 [shape = 'u32[]', space=smem, size = 0x4, offset = 0x4, fixed_abs, tag = 'smem constant byte address 0x4 - core index']
  #allocation1 [shape = 'u32[144,128]{1,0:T(1,128)}', space=vmem, size = 0x12000, scoped, tag = 'internal scratch']
  #allocation2 [shape = 'f32[16,128]{1,0:T(8,128)}', space=vmem, size = 0x2000, scoped, tag = 'scratch operand']
  #allocation3 [shape = 's32[16,1]{1,0:T(8,128)}', space=vmem, size = 0x2000, scoped, tag = 'scratch operand']
  #allocation4 [shape = 's32[1]{0}', space=sflag, size = 0x4, scoped, tag = 'scoped memory for tpu_custom_call.1']
  #allocation5 [shape = 'u8[512]{0}', space=smem, size = 0x200, scoped, tag = 'prefetched SMEM operand 0']
  #allocation6 [shape = 'u8[512]{0}', space=smem, size = 0x200, scoped, tag = 'prefetched SMEM operand 1']
  %s0 = inlined_call_operand.hbm [shape: s32[2], index: 0, kind: input, shape index: {}]
  %s1 = inlined_call_operand.hbm [shape: s32[2], index: 1, kind: input, shape index: {}]
  %s2 = inlined_call_operand.vmem [shape: s32[1,384], index: 2, kind: input, shape index: {}]
  %s3 = inlined_call_operand.hbm [shape: f32[32,128], index: 3, kind: input, shape index: {}]
  %s4 = inlined_call_operand.hbm [shape: f32[384,128], index: 4, kind: input, shape index: {}]
  %s5 = inlined_call_operand.hbm [shape: f32[128,128], index: 5, kind: input, shape index: {}]
  %s6 = inlined_call_operand.hbm [shape: f32[128,128], index: 6, kind: input, shape index: {}]
  %s7 = inlined_call_operand.vmem [shape: f32[1,128], index: 7, kind: input, shape index: {}]
  %s8 = inlined_call_operand.hbm [shape: f32[128,128], index: 8, kind: input, shape index: {}]
  %s9 = inlined_call_operand.vmem [shape: f32[1,128], index: 9, kind: input, shape index: {}]
  %s10 = inlined_call_operand.hbm [shape: f32[32,128], index: 10, kind: output, shape index: {}]
  %s11 = sld [smem:[#allocation0]]
  $region97: #{tpu_custom_call.1} parent=0
    _
  %s13 = ssub.s32 1, %s11
  %s14 = scalar_select 0, %s13, %s11
  %16 = dma.hbm_to_smem %s0, 16, [#allocation5], [#allocation4]
  %18 = dma.hbm_to_smem %s1, 16, [#allocation6], [#allocation4]
  %19 = dma.done [#allocation4], 32
  %20 = sfence
  $region1: #{tpu_custom_call.1} parent=0
    #allocation7 [shape = 'u8[16384]{0}', space=vmem, size = 0x4000, scoped, tag = 'input window, operand 3']
    #allocation8 [shape = 's32[2]{0}', space=sflag, size = 0x8, scoped, tag = 'scoped memory for tpu_custom_call.1']
    #allocation9 [shape = 's32[2]{0}', space=sflag, size = 0x8, scoped, tag = 'scoped memory for tpu_custom_call.1']
    #allocation10 [shape = 'u8[131072]{0}', space=vmem, size = 0x20000, scoped, tag = 'input window, operand 4']
    #allocation11 [shape = 's32[2]{0}', space=sflag, size = 0x8, scoped, tag = 'scoped memory for tpu_custom_call.1']
    #allocation12 [shape = 'u8[65536]{0}', space=vmem, size = 0x10000, scoped, tag = 'input window, operand 5, single buffered']
    #allocation13 [shape = 'u8[65536]{0}', space=vmem, size = 0x10000, scoped, tag = 'input window, operand 6, single buffered']
    #allocation14 [shape = 's32[1]{0}', space=sflag, size = 0x4, scoped, tag = 'scoped memory for tpu_custom_call.1']
    #allocation15 [shape = 'u8[65536]{0}', space=vmem, size = 0x10000, scoped, tag = 'input window, operand 8, single buffered']
    #allocation16 [shape = 'u8[16384]{0}', space=vmem, size = 0x4000, scoped, tag = 'output window, operand 0']
    %21 = vsyncpa [#allocation8], 0
    %s22 = scalar_lea.sflag [#allocation8], 1
    %23 = vsyncpa %s22, 0
    %24 = vsyncpa [#allocation11], 0
    %s25 = scalar_lea.sflag [#allocation11], 1
    %26 = vsyncpa %s25, 0
    %27 = vsyncpa [#allocation14], 0
    %28 = vsyncpa [#allocation9], 0
    %s29 = scalar_lea.sflag [#allocation9], 1
    %30 = vsyncpa %s29, 0
    loop: start=0, step=1, limit=6
    $region2: #{tpu_custom_call.1} parent=1 // loop_pre_header
      _
    $region3: #{tpu_custom_call.1} parent=1 // loop_header
      %s32 = sphi 0, %s36
      %p33 = scmp.ge.s32.totalorder %s32, 6
      %s39 = sphi 0, %s51
      %s40 = sphi 0, %s47
      %s41 = sphi 0, %s39
      %s42 = sphi 0, %s40
      %s43 = sphi 0, %s41
      %s44 = sphi 0, %s42
      %s70 = sphi 0, %s72
      %s73 = sphi 0, %s70
      %s74 = sphi 0, %s73
      %s90 = sphi 0, %s74
      %s96 = sphi 0, %s98
      %s99 = sphi 0, %s96
      %s100 = sphi 0, %s99
      %s116 = sphi 0, %s100
      %s138 = sphi 0, %s140
      %s141 = sphi 0, %s138
      %s142 = sphi 0, %s141
      %s158 = sphi 0, %s142
      %s162 = sphi 0, %s162
      %s164 = sphi 0, %s162
      %s165 = sphi 0, %s164
      %s179 = sphi 0, %s165
      %s183 = sphi 0, %s183
      %s185 = sphi 0, %s183
      %s186 = sphi 0, %s185
      %s200 = sphi 0, %s186
      %s204 = sphi 0, %s204
      %s206 = sphi 0, %s204
      %s207 = sphi 0, %s206
      %s221 = sphi 0, %s207
      %s225 = sphi 0, %s225
      %s227 = sphi 0, %s225
      %s228 = sphi 0, %s227
      %s242 = sphi 0, %s228
      %s246 = sphi 0, %s246
      %s248 = sphi 0, %s246
      %s249 = sphi 0, %s248
      %s263 = sphi 0, %s249
      %s269 = sphi 0, %s271
      %s272 = sphi 0, %s269
      %s273 = sphi 0, %s272
      %s289 = sphi 0, %s273
    $region4: #{tpu_custom_call.1} parent=1 // loop_header_branch
      %35 = sbr.rel (%p33) target = $region8
    $region5: #{tpu_custom_call.1} parent=1 // loop_body
      %s37 = ssub.s32 %s32, 1
      %s38 = ssub.s32 %s32, 2
      %s45 = sadd.s32 1, %s40
      %p46 = scmp.ge.s32.totalorder %s45, 2
      %s47 = scalar_select %p46, 0, %s45
      %s48 = sadd.s32 1, %s39
      %s49 = scalar_select %p46, %s48, %s39
      %p50 = scmp.ge.s32.totalorder %s49, 2
      %s51 = scalar_select %p50, 0, %s49
      %s52 = sld [smem:[#allocation6 + %s39]]
      %p53 = scmp.gt.s32.totalorder %s52, 1
      %s54 = scalar_select %p53, %s52, 1
      %s55 = ssub.s32 %s54, 1
      %s56 = sld [smem:[#allocation5 + %s39]]
      %p57 = scmp.lt.s32.totalorder %s40, %s55
      %s58 = scalar_select %p57, %s40, %s55
      %s59 = sadd.s32 %s56, %s58
      %s60 = sld [smem:[#allocation6 + %s51]]
      %p61 = scmp.gt.s32.totalorder %s60, 1
      %s62 = scalar_select %p61, %s60, 1
      %s63 = ssub.s32 %s62, 1
      %s64 = sld [smem:[#allocation5 + %s51]]
      %p65 = scmp.lt.s32.totalorder %s47, %s63
      %s66 = scalar_select %p65, %s47, %s63
      %s67 = sadd.s32 %s64, %s66
      %s68 = ssub.s32 %s59, %s67
      %p69 = scmp.eq.s32.totalorder %s68, 0
      %s71 = sadd.s32 %s70, 1
      %s72 = scalar_select %p69, %s70, %s71
      %p75 = pneg %p69
      %p76 = scmp.eq.s32.totalorder %s32, 3
      %p77 = por %p75, %p76
      %p78 = scmp.ne.s32.totalorder %s70, %s73
      %p79 = scmp.eq.s32.totalorder %s32, 0
      %p80 = por %p78, %p79
      %p81 = scmp.ne.s32.totalorder %s70, %s73
      %p82 = scmp.eq.s32.totalorder %s37, 3
      %p83 = por %p81, %p82
      %p84 = scmp.ne.s32.totalorder %s73, %s74
      %p85 = scmp.eq.s32.totalorder %s37, 0
      %p86 = por %p84, %p85
      %p87 = scmp.ne.s32.totalorder %s73, %s74
      %p88 = scmp.eq.s32.totalorder %s38, 3
      %p89 = por %p87, %p88
      %p91 = scmp.ne.s32.totalorder %s74, %s90
      %p92 = scmp.eq.s32.totalorder %s38, 0
      %p93 = por %p91, %p92
      %s94 = ssub.s32 %s39, %s51
      %p95 = scmp.eq.s32.totalorder %s94, 0
      %s97 = sadd.s32 %s96, 1
      %s98 = scalar_select %p95, %s96, %s97
      %p101 = pneg %p95
      %p102 = scmp.eq.s32.totalorder %s32, 3
      %p103 = por %p101, %p102
      %p104 = scmp.ne.s32.totalorder %s96, %s99
      %p105 = scmp.eq.s32.totalorder %s32, 0
      %p106 = por %p104, %p105
      %p107 = scmp.ne.s32.totalorder %s96, %s99
      %p108 = scmp.eq.s32.totalorder %s37, 3
      %p109 = por %p107, %p108
      %p110 = scmp.ne.s32.totalorder %s99, %s100
      %p111 = scmp.eq.s32.totalorder %s37, 0
      %p112 = por %p110, %p111
      %p113 = scmp.ne.s32.totalorder %s99, %s100
      %p114 = scmp.eq.s32.totalorder %s38, 3
      %p115 = por %p113, %p114
      %p117 = scmp.ne.s32.totalorder %s100, %s116
      %p118 = scmp.eq.s32.totalorder %s38, 0
      %p119 = por %p117, %p118
      %s120 = sld [smem:[#allocation6 + %s39]]
      %p121 = scmp.gt.s32.totalorder %s120, 1
      %s122 = scalar_select %p121, %s120, 1
      %s123 = ssub.s32 %s122, 1
      %s124 = sld [smem:[#allocation5 + %s39]]
      %p125 = scmp.lt.s32.totalorder %s40, %s123
      %s126 = scalar_select %p125, %s40, %s123
      %s127 = sadd.s32 %s124, %s126
      %s128 = sld [smem:[#allocation6 + %s51]]
      %p129 = scmp.gt.s32.totalorder %s128, 1
      %s130 = scalar_select %p129, %s128, 1
      %s131 = ssub.s32 %s130, 1
      %s132 = sld [smem:[#allocation5 + %s51]]
      %p133 = scmp.lt.s32.totalorder %s47, %s131
      %s134 = scalar_select %p133, %s47, %s131
      %s135 = sadd.s32 %s132, %s134
      %s136 = ssub.s32 %s127, %s135
      %p137 = scmp.eq.s32.totalorder %s136, 0
      %s139 = sadd.s32 %s138, 1
      %s140 = scalar_select %p137, %s138, %s139
      %p143 = pneg %p137
      %p144 = scmp.eq.s32.totalorder %s32, 3
      %p145 = por %p143, %p144
      %p146 = scmp.ne.s32.totalorder %s138, %s141
      %p147 = scmp.eq.s32.totalorder %s32, 0
      %p148 = por %p146, %p147
      %p149 = scmp.ne.s32.totalorder %s138, %s141
      %p150 = scmp.eq.s32.totalorder %s37, 3
      %p151 = por %p149, %p150
      %p152 = scmp.ne.s32.totalorder %s141, %s142
      %p153 = scmp.eq.s32.totalorder %s37, 0
      %p154 = por %p152, %p153
      %p155 = scmp.ne.s32.totalorder %s141, %s142
      %p156 = scmp.eq.s32.totalorder %s38, 3
      %p157 = por %p155, %p156
      %p159 = scmp.ne.s32.totalorder %s142, %s158
      %p160 = scmp.eq.s32.totalorder %s38, 0
      %p161 = por %p159, %p160
      %s163 = sadd.s32 %s162, 1
      %p166 = scmp.eq.s32.totalorder %s32, 3
      %p167 = scmp.ne.s32.totalorder %s162, %s164
      %p168 = scmp.eq.s32.totalorder %s32, 0
      %p169 = por %p167, %p168
      %p170 = scmp.ne.s32.totalorder %s162, %s164
      %p171 = scmp.eq.s32.totalorder %s37, 3
      %p172 = por %p170, %p171
      %p173 = scmp.ne.s32.totalorder %s164, %s165
      %p174 = scmp.eq.s32.totalorder %s37, 0
      %p175 = por %p173, %p174
      %p176 = scmp.ne.s32.totalorder %s164, %s165
      %p177 = scmp.eq.s32.totalorder %s38, 3
      %p178 = por %p176, %p177
      %p180 = scmp.ne.s32.totalorder %s165, %s179
      %p181 = scmp.eq.s32.totalorder %s38, 0
      %p182 = por %p180, %p181
      %s184 = sadd.s32 %s183, 1
      %p187 = scmp.eq.s32.totalorder %s32, 3
      %p188 = scmp.ne.s32.totalorder %s183, %s185
      %p189 = scmp.eq.s32.totalorder %s32, 0
      %p190 = por %p188, %p189
      %p191 = scmp.ne.s32.totalorder %s183, %s185
      %p192 = scmp.eq.s32.totalorder %s37, 3
      %p193 = por %p191, %p192
      %p194 = scmp.ne.s32.totalorder %s185, %s186
      %p195 = scmp.eq.s32.totalorder %s37, 0
      %p196 = por %p194, %p195
      %p197 = scmp.ne.s32.totalorder %s185, %s186
      %p198 = scmp.eq.s32.totalorder %s38, 3
      %p199 = por %p197, %p198
      %p201 = scmp.ne.s32.totalorder %s186, %s200
      %p202 = scmp.eq.s32.totalorder %s38, 0
      %p203 = por %p201, %p202
      %s205 = sadd.s32 %s204, 1
      %p208 = scmp.eq.s32.totalorder %s32, 3
      %p209 = scmp.ne.s32.totalorder %s204, %s206
      %p210 = scmp.eq.s32.totalorder %s32, 0
      %p211 = por %p209, %p210
      %p212 = scmp.ne.s32.totalorder %s204, %s206
      %p213 = scmp.eq.s32.totalorder %s37, 3
      %p214 = por %p212, %p213
      %p215 = scmp.ne.s32.totalorder %s206, %s207
      %p216 = scmp.eq.s32.totalorder %s37, 0
      %p217 = por %p215, %p216
      %p218 = scmp.ne.s32.totalorder %s206, %s207
      %p219 = scmp.eq.s32.totalorder %s38, 3
      %p220 = por %p218, %p219
      %p222 = scmp.ne.s32.totalorder %s207, %s221
      %p223 = scmp.eq.s32.totalorder %s38, 0
      %p224 = por %p222, %p223
      %s226 = sadd.s32 %s225, 1
      %p229 = scmp.eq.s32.totalorder %s32, 3
      %p230 = scmp.ne.s32.totalorder %s225, %s227
      %p231 = scmp.eq.s32.totalorder %s32, 0
      %p232 = por %p230, %p231
      %p233 = scmp.ne.s32.totalorder %s225, %s227
      %p234 = scmp.eq.s32.totalorder %s37, 3
      %p235 = por %p233, %p234
      %p236 = scmp.ne.s32.totalorder %s227, %s228
      %p237 = scmp.eq.s32.totalorder %s37, 0
      %p238 = por %p236, %p237
      %p239 = scmp.ne.s32.totalorder %s227, %s228
      %p240 = scmp.eq.s32.totalorder %s38, 3
      %p241 = por %p239, %p240
      %p243 = scmp.ne.s32.totalorder %s228, %s242
      %p244 = scmp.eq.s32.totalorder %s38, 0
      %p245 = por %p243, %p244
      %s247 = sadd.s32 %s246, 1
      %p250 = scmp.eq.s32.totalorder %s32, 3
      %p251 = scmp.ne.s32.totalorder %s246, %s248
      %p252 = scmp.eq.s32.totalorder %s32, 0
      %p253 = por %p251, %p252
      %p254 = scmp.ne.s32.totalorder %s246, %s248
      %p255 = scmp.eq.s32.totalorder %s37, 3
      %p256 = por %p254, %p255
      %p257 = scmp.ne.s32.totalorder %s248, %s249
      %p258 = scmp.eq.s32.totalorder %s37, 0
      %p259 = por %p257, %p258
      %p260 = scmp.ne.s32.totalorder %s248, %s249
      %p261 = scmp.eq.s32.totalorder %s38, 3
      %p262 = por %p260, %p261
      %p264 = scmp.ne.s32.totalorder %s249, %s263
      %p265 = scmp.eq.s32.totalorder %s38, 0
      %p266 = por %p264, %p265
      %s267 = ssub.s32 %s39, %s51
      %p268 = scmp.eq.s32.totalorder %s267, 0
      %s270 = sadd.s32 %s269, 1
      %s271 = scalar_select %p268, %s269, %s270
      %p274 = pneg %p268
      %p275 = scmp.eq.s32.totalorder %s32, 3
      %p276 = por %p274, %p275
      %p277 = scmp.ne.s32.totalorder %s269, %s272
      %p278 = scmp.eq.s32.totalorder %s32, 0
      %p279 = por %p277, %p278
      %p280 = scmp.ne.s32.totalorder %s269, %s272
      %p281 = scmp.eq.s32.totalorder %s37, 3
      %p282 = por %p280, %p281
      %p283 = scmp.ne.s32.totalorder %s272, %s273
      %p284 = scmp.eq.s32.totalorder %s37, 0
      %p285 = por %p283, %p284
      %p286 = scmp.ne.s32.totalorder %s272, %s273
      %p287 = scmp.eq.s32.totalorder %s38, 3
      %p288 = por %p286, %p287
      %p290 = scmp.ne.s32.totalorder %s273, %s289
      %p291 = scmp.eq.s32.totalorder %s38, 0
      %p292 = por %p290, %p291
      %p293 = scmp.le.s32.totalorder 1, %s32
      %p294 = scmp.lt.s32.totalorder %s32, 5
      %p295 = pnand %p293, %p294
      %p296 = pneg %p295
      // Predicated region
      $region9: #{tpu_custom_call.1} parent=5 // pred_check
        _
      $region10: #{tpu_custom_call.1} parent=5 // pred_check_branch
        %298 = sbr.rel (%p295) target = $region12
      $region11: #{tpu_custom_call.1} parent=5 // pred_region
        %s299 = ssub.s32 %s32, 1
        // Predicated region
        $region13: #{tpu_custom_call.1} parent=11 // pred_check
          %p300 = pneg %p175
        $region14: #{tpu_custom_call.1} parent=11 // pred_check_branch
          %302 = sbr.rel (%p300) target = $region16
        $region15: #{tpu_custom_call.1} parent=11 // pred_region
          %s304 = ssub.s32 2048, 2048
          %305 = vsyncadd [#allocation11], %s304
          %s306 = sshll.u32 [#allocation12], 4
          %s307 = int_to_ptr.vmem [resolvable:$true] %s306
          %312 = dma.hbm_to_vmem [thread:$0]  %s5, 2048, %s307, [#allocation11], 128, 128, 8
        $region16: #{tpu_custom_call.1} parent=11 // pred_fallthru
          _
        // Predicated region
        $region17: #{tpu_custom_call.1} parent=11 // pred_check
          %p313 = pneg %p196
        $region18: #{tpu_custom_call.1} parent=11 // pred_check_branch
          %315 = sbr.rel (%p313) target = $region20
        $region19: #{tpu_custom_call.1} parent=11 // pred_region
          %s317 = ssub.s32 2048, 2048
          %318 = vsyncadd [#allocation14], %s317
          %s319 = sshll.u32 [#allocation13], 4
          %s320 = int_to_ptr.vmem [resolvable:$true] %s319
          %325 = dma.hbm_to_vmem [thread:$0]  %s6, 2048, %s320, [#allocation14], 128, 128, 8
        $region20: #{tpu_custom_call.1} parent=11 // pred_fallthru
          _
        // Predicated region
        $region21: #{tpu_custom_call.1} parent=11 // pred_check
          %p326 = pneg %p217
        $region22: #{tpu_custom_call.1} parent=11 // pred_check_branch
          %328 = sbr.rel (%p326) target = $region24
        $region23: #{tpu_custom_call.1} parent=11 // pred_region
          _
        $region24: #{tpu_custom_call.1} parent=11 // pred_fallthru
          _
        // Predicated region
        $region25: #{tpu_custom_call.1} parent=11 // pred_check
          %p329 = pneg %p238
        $region26: #{tpu_custom_call.1} parent=11 // pred_check_branch
          %331 = sbr.rel (%p329) target = $region28
        $region27: #{tpu_custom_call.1} parent=11 // pred_region
          %s333 = ssub.s32 2048, 2048
          %334 = vsyncadd [#allocation14], %s333
          %s335 = sshll.u32 [#allocation15], 4
          %s336 = int_to_ptr.vmem [resolvable:$true] %s335
          %341 = dma.hbm_to_vmem [thread:$0]  %s8, 2048, %s336, [#allocation14], 128, 128, 8
        $region28: #{tpu_custom_call.1} parent=11 // pred_fallthru
          _
        // Predicated region
        $region29: #{tpu_custom_call.1} parent=11 // pred_check
          %p342 = pneg %p259
        $region30: #{tpu_custom_call.1} parent=11 // pred_check_branch
          %344 = sbr.rel (%p342) target = $region32
        $region31: #{tpu_custom_call.1} parent=11 // pred_region
          _
        $region32: #{tpu_custom_call.1} parent=11 // pred_fallthru
          _
      $region12: #{tpu_custom_call.1} parent=5 // pred_fallthru
        _
      %p345 = scmp.lt.s32.totalorder %s32, 4
      // Predicated region
      $region33: #{tpu_custom_call.1} parent=5 // pred_check
        %p346 = pneg %p345
      $region34: #{tpu_custom_call.1} parent=5 // pred_check_branch
        %348 = sbr.rel (%p346) target = $region36
      $region35: #{tpu_custom_call.1} parent=5 // pred_region
        // Predicated region
        $region37: #{tpu_custom_call.1} parent=35 // pred_check
          %p349 = pneg %p80
        $region38: #{tpu_custom_call.1} parent=35 // pred_check_branch
          %351 = sbr.rel (%p349) target = $region40
        $region39: #{tpu_custom_call.1} parent=35 // pred_region
          %s352 = sld [smem:[#allocation6 + %s39]]
          %p353 = scmp.gt.s32.totalorder %s352, 1
          %s354 = scalar_select %p353, %s352, 1
          %s355 = ssub.s32 %s354, 1
          %s356 = sld [smem:[#allocation5 + %s39]]
          %p357 = scmp.lt.s32.totalorder %s40, %s355
          %s358 = scalar_select %p357, %s40, %s355
          %s359 = sadd.s32 %s356, %s358
          %p360 = scmp.lt.s32.totalorder %s359, 2
          %s361 = scalar_select %p360, %s359, 2
          %s362 = scalar_lea.vmem %s2, %s361
          %s363 = sld [smem:[#allocation6 + %s39]]
          %p364 = scmp.gt.s32.totalorder %s363, 1
          %s365 = scalar_select %p364, %s363, 1
          %s366 = ssub.s32 %s365, 1
          %s367 = sld [smem:[#allocation5 + %s39]]
          %p368 = scmp.lt.s32.totalorder %s40, %s366
          %s369 = scalar_select %p368, %s40, %s366
          %s370 = sadd.s32 %s367, %s369
        $region40: #{tpu_custom_call.1} parent=35 // pred_fallthru
          _
        // Predicated region
        $region41: #{tpu_custom_call.1} parent=35 // pred_check
          %p371 = pneg %p106
        $region42: #{tpu_custom_call.1} parent=35 // pred_check_branch
          %373 = sbr.rel (%p371) target = $region44
        $region43: #{tpu_custom_call.1} parent=35 // pred_region
          %s374 = sand.u32 %s96, 1
          %s375 = scalar_lea.sflag [#allocation8], %s374
          %s376 = sand.u32 %s96, 1
          %s377 = smul.addr %s376, 16
          %s378 = scalar_lea.vmem [#allocation7], %s377
          %s379 = smul.u32 2, %s39
          %s381 = ssub.s32 256, 256
          %382 = vsyncadd %s375, %s381
          %s383 = smul.addr %s379, 128
          %s384 = scalar_lea.hbm %s3, %s383
          %s385 = sshll.u32 %s378, 4
          %s386 = int_to_ptr.vmem [resolvable:$true] %s385
          %391 = dma.hbm_to_vmem [thread:$0]  %s384, 256, %s386, %s375, 128, 128, 8
        $region44: #{tpu_custom_call.1} parent=35 // pred_fallthru
          _
        // Predicated region
        $region45: #{tpu_custom_call.1} parent=35 // pred_check
          %p392 = pneg %p148
        $region46: #{tpu_custom_call.1} parent=35 // pred_check_branch
          %394 = sbr.rel (%p392) target = $region48
        $region47: #{tpu_custom_call.1} parent=35 // pred_region
          %s395 = sand.u32 %s32, 1
          %s396 = scalar_lea.sflag [#allocation11], %s395
          %s397 = sand.u32 %s138, 1
          %s398 = smul.addr %s397, 128
          %s399 = scalar_lea.vmem [#allocation10], %s398
          %s400 = sld [smem:[#allocation6 + %s39]]
          %p401 = scmp.gt.s32.totalorder %s400, 1
          %s402 = scalar_select %p401, %s400, 1
          %s403 = ssub.s32 %s402, 1
          %s404 = sld [smem:[#allocation5 + %s39]]
          %p405 = scmp.lt.s32.totalorder %s40, %s403
          %s406 = scalar_select %p405, %s40, %s403
          %s407 = sadd.s32 %s404, %s406
          %s408 = smul.u32 16, %s407
          %s410 = ssub.s32 2048, 2048
          %411 = vsyncadd %s396, %s410
          %s412 = smul.addr %s408, 128
          %s413 = scalar_lea.hbm %s4, %s412
          %s414 = sshll.u32 %s399, 4
          %s415 = int_to_ptr.vmem [resolvable:$true] %s414
          %420 = dma.hbm_to_vmem [thread:$0]  %s413, 2048, %s415, %s396, 128, 128, 8
        $region48: #{tpu_custom_call.1} parent=35 // pred_fallthru
          _
      $region36: #{tpu_custom_call.1} parent=5 // pred_fallthru
        _
      %p421 = scmp.le.s32.totalorder 1, %s32
      %p422 = scmp.lt.s32.totalorder %s32, 5
      %p423 = pnand %p421, %p422
      %p424 = pneg %p423
      // Predicated region
      $region49: #{tpu_custom_call.1} parent=5 // pred_check
        _
      $region50: #{tpu_custom_call.1} parent=5 // pred_check_branch
        %426 = sbr.rel (%p423) target = $region52
      $region51: #{tpu_custom_call.1} parent=5 // pred_region
        %s427 = ssub.s32 %s32, 1
        %s428 = sand.u32 %s99, 1
        %s429 = scalar_lea.sflag [#allocation8], %s428
        %s430 = sand.u32 %s99, 1
        %s431 = smul.addr %s430, 16
        %s432 = scalar_lea.vmem [#allocation7], %s431
        // Predicated region
        $region53: #{tpu_custom_call.1} parent=51 // pred_check
          %p433 = pneg %p112
        $region54: #{tpu_custom_call.1} parent=51 // pred_check_branch
          %435 = sbr.rel (%p433) target = $region56
        $region55: #{tpu_custom_call.1} parent=51 // pred_region
          %436 = dma.done %s429, 256
        $region56: #{tpu_custom_call.1} parent=51 // pred_fallthru
          _
        %s437 = sand.u32 %s37, 1
        %s438 = scalar_lea.sflag [#allocation11], %s437
        %s439 = sand.u32 %s141, 1
        %s440 = smul.addr %s439, 128
        %s441 = scalar_lea.vmem [#allocation10], %s440
        // Predicated region
        $region57: #{tpu_custom_call.1} parent=51 // pred_check
          %p442 = pneg %p154
        $region58: #{tpu_custom_call.1} parent=51 // pred_check_branch
          %444 = sbr.rel (%p442) target = $region60
        $region59: #{tpu_custom_call.1} parent=51 // pred_region
          %445 = dma.done %s438, 2048
        $region60: #{tpu_custom_call.1} parent=51 // pred_fallthru
          _
        // Predicated region
        $region61: #{tpu_custom_call.1} parent=51 // pred_check
          %p446 = pneg %p175
        $region62: #{tpu_custom_call.1} parent=51 // pred_check_branch
          %448 = sbr.rel (%p446) target = $region64
        $region63: #{tpu_custom_call.1} parent=51 // pred_region
          %449 = dma.done [#allocation11], 2048
        $region64: #{tpu_custom_call.1} parent=51 // pred_fallthru
          _
        // Predicated region
        $region65: #{tpu_custom_call.1} parent=51 // pred_check
          %p450 = pneg %p196
        $region66: #{tpu_custom_call.1} parent=51 // pred_check_branch
          %452 = sbr.rel (%p450) target = $region68
        $region67: #{tpu_custom_call.1} parent=51 // pred_region
          %453 = dma.done [#allocation14], 2048
        $region68: #{tpu_custom_call.1} parent=51 // pred_fallthru
          _
        // Predicated region
        $region69: #{tpu_custom_call.1} parent=51 // pred_check
          %p454 = pneg %p238
        $region70: #{tpu_custom_call.1} parent=51 // pred_check_branch
          %456 = sbr.rel (%p454) target = $region72
        $region71: #{tpu_custom_call.1} parent=51 // pred_region
          %457 = dma.done [#allocation14], 2048
        $region72: #{tpu_custom_call.1} parent=51 // pred_fallthru
          _
        %s458 = sld [smem:[#allocation6 + %s41]]
        %p459 = scmp.gt.s32.totalorder %s458, 1
        %s460 = scalar_select %p459, %s458, 1
        %s461 = ssub.s32 %s460, 1
        %s462 = sld [smem:[#allocation5 + %s41]]
        %p463 = scmp.lt.s32.totalorder %s42, %s461
        %s464 = scalar_select %p463, %s42, %s461
        %s465 = sadd.s32 %s462, %s464
        %p466 = scmp.lt.s32.totalorder %s465, 2
        %s467 = scalar_select %p466, %s465, 2
        %s468 = scalar_lea.vmem %s2, %s467
        %p469 = pneg %p86
        %p470 = pneg %p83
        %s471 = sand.u32 %s99, 1
        %s472 = scalar_lea.sflag [#allocation8], %s471
        %s473 = sand.u32 %s99, 1
        %s474 = smul.addr %s473, 16
        %s475 = scalar_lea.vmem [#allocation7], %s474
        %p476 = pneg %p112
        %p477 = pneg %p109
        %s478 = sand.u32 %s37, 1
        %s479 = scalar_lea.sflag [#allocation11], %s478
        %s480 = sand.u32 %s141, 1
        %s481 = smul.addr %s480, 128
        %s482 = scalar_lea.vmem [#allocation10], %s481
        %p483 = pneg %p154
        %p484 = pneg %p151
        %p485 = pneg %p175
        %p486 = pneg %p172
        %p487 = pneg %p196
        %p488 = pneg %p193
        %p489 = pneg %p217
        %p490 = pneg %p214
        %p491 = pneg %p238
        %p492 = pneg %p235
        %p493 = pneg %p259
        %p494 = pneg %p256
        %p495 = pneg %p285
        %p496 = pneg %p282
        %s497 = sand.u32 %s272, 1
        %s498 = scalar_lea.sflag [#allocation9], %s497
        %s499 = sand.u32 %s272, 1
        %s500 = smul.addr %s499, 16
        %s501 = scalar_lea.vmem [#allocation16], %s500
        %s502 = sld [smem:[#allocation6 + %s41]]
        %p503 = scmp.gt.s32.totalorder %s502, 1
        %s504 = scalar_select %p503, %s502, 1
        %s505 = ssub.s32 %s504, 1
        %s506 = sld [smem:[#allocation5 + %s41]]
        %p507 = scmp.lt.s32.totalorder %s42, %s505
        %s508 = scalar_select %p507, %s42, %s505
        %s509 = sadd.s32 %s506, %s508
        %p510 = scmp.lt.s32.totalorder %s509, 2
        %s511 = scalar_select %p510, %s509, 2
        %s512 = scalar_lea.vmem %s2, %s511
        %s513 = sld [smem:[#allocation6 + %s41]]
        %p514 = scmp.gt.s32.totalorder %s513, 1
        %s515 = scalar_select %p514, %s513, 1
        %s516 = ssub.s32 %s515, 1
        %s517 = sld [smem:[#allocation5 + %s41]]
        %p518 = scmp.lt.s32.totalorder %s42, %s516
        %s519 = scalar_select %p518, %s42, %s516
        %s520 = sadd.s32 %s517, %s519
        %s521 = smul.u32 2, %s41
        %s522 = sld [smem:[#allocation6 + %s41]]
        %p523 = scmp.gt.s32.totalorder %s522, 1
        %s524 = scalar_select %p523, %s522, 1
        %s525 = ssub.s32 %s524, 1
        %s526 = sld [smem:[#allocation5 + %s41]]
        %p527 = scmp.lt.s32.totalorder %s42, %s525
        %s528 = scalar_select %p527, %s42, %s525
        %s529 = sadd.s32 %s526, %s528
        %s530 = smul.u32 16, %s529
        %s531 = smul.u32 2, %s41
        %p532 = scmp.eq.s32.totalorder %s42, 0
        // Predicated region
        $region73: #{tpu_custom_call.1} parent=51 // pred_check
          %p533 = pneg %p532
        $region74: #{tpu_custom_call.1} parent=51 // pred_check_branch
          %535 = sbr.rel (%p533) target = $region76
        $region75: #{tpu_custom_call.1} parent=51 // pred_region
          %536 = vst [vmem:[#allocation2] sm:$0xff] 0.0
          %537 = vst [vmem:[#allocation2 + $0x8] sm:$0xff] 0.0
          %s538 = smul.u32 %s41, 16
          %v539 = vlaneseq
          %v540 = vshrl.u32 %v539, 7
          %v541 = vadd.s32 %v540, 8
          %v542 = vstv %s538
          %v543 = vadd.s32 %v542, %v540
          %v544 = vadd.s32 %v542, %v541
          %vm545 = vcmask 7168
          %546 = vst.msk [vmem:[#allocation3] sm:$0xff] %vm545, %v543
          %547 = vst.msk [vmem:[#allocation3 + $0x8] sm:$0xff] %vm545, %v544
        $region76: #{tpu_custom_call.1} parent=51 // pred_fallthru
          _
        %s548 = sld [smem:[#allocation6 + %s41]]
        %p549 = scmp.lt.s32.totalorder %s42, %s548
        // Predicated region
        $region77: #{tpu_custom_call.1} parent=51 // pred_check
          %p550 = pneg %p549
        $region78: #{tpu_custom_call.1} parent=51 // pred_check_branch
          %552 = sbr.rel (%p550) target = $region80
        $region79: #{tpu_custom_call.1} parent=51 // pred_region
          %v553 = vld [vmem:[#allocation3] sm:$0xff]
          %v554 = vld [vmem:[#allocation3 + $0x8] sm:$0xff]
          %v555 = vld [vmem:[%s512] sm:$0x1]
          %556 = vset.pattern.permute.xlu0 0
          %557 = vperm.xlu0 %556, %v553
          %v558 = vpop.permute.xlu0 %557
          %559 = vset.pattern.permute.xlu0 0
          %560 = vperm.xlu0 %559, %v554
          %v561 = vpop.permute.xlu0 %560
          %v562 = vlaneseq
          %v563 = vshrl.u32 %v562, 7
          %v564 = vsub.s32 0, %v563
          %v565 = vrot.slane %v555, %v564
          %vm566 = vcmp.eq.s32.totalorder %v558, %v565
          %vm567 = vcmp.eq.s32.totalorder %v561, %v565
          %v568 = vsel %vm566, 1, 0
          %v569 = vsel %vm567, 1, 0
          %v570 = vcvt.s32.f32 %v568
          %v571 = vcvt.s32.f32 %v569
          %v572 = vld [vmem:[#allocation2] sm:$0xff]
          %v573 = vld [vmem:[#allocation2 + $0x8] sm:$0xff]
          %v574 = vld [vmem:[%s441] sm:$0xff]
          %v575 = vld [vmem:[%s441 + $0x8] sm:$0xff]
          %v576 = vld [vmem:[%s441 + $0x10] sm:$0xff]
          %v577 = vld [vmem:[%s441 + $0x18] sm:$0xff]
          %v578 = vld [vmem:[%s441 + $0x20] sm:$0xff]
          %v579 = vld [vmem:[%s441 + $0x28] sm:$0xff]
          %v580 = vld [vmem:[%s441 + $0x30] sm:$0xff]
          %v581 = vld [vmem:[%s441 + $0x38] sm:$0xff]
          %v582 = vld [vmem:[%s441 + $0x40] sm:$0xff]
          %v583 = vld [vmem:[%s441 + $0x48] sm:$0xff]
          %v584 = vld [vmem:[%s441 + $0x50] sm:$0xff]
          %v585 = vld [vmem:[%s441 + $0x58] sm:$0xff]
          %v586 = vld [vmem:[%s441 + $0x60] sm:$0xff]
          %v587 = vld [vmem:[%s441 + $0x68] sm:$0xff]
          %v588 = vld [vmem:[%s441 + $0x70] sm:$0xff]
          %v589 = vld [vmem:[%s441 + $0x78] sm:$0xff]
          %590 = vmatprep.subr.mxu0 0.0
          %591 = vmatpush1.msra.mxu0 %v589
          %592 = vmatprep.subr.mxu0 0.0
          %593 = vmatpush1.msra.mxu0 %v588
          %594 = vmatprep.subr.mxu0 0.0
          %595 = vmatpush1.msra.mxu0 %v587
          %596 = vmatprep.subr.mxu0 0.0
          %597 = vmatpush1.msra.mxu0 %v586
          %598 = vmatprep.subr.mxu0 0.0
          %599 = vmatpush1.msra.mxu0 %v585
          %600 = vmatprep.subr.mxu0 0.0
          %601 = vmatpush1.msra.mxu0 %v584
          %602 = vmatprep.subr.mxu0 0.0
          %603 = vmatpush1.msra.mxu0 %v583
          %604 = vmatprep.subr.mxu0 0.0
          %605 = vmatpush1.msra.mxu0 %v582
          %606 = vmatprep.subr.mxu0 0.0
          %607 = vmatpush1.msra.mxu0 %v581
          %608 = vmatprep.subr.mxu0 0.0
          %609 = vmatpush1.msra.mxu0 %v580
          %610 = vmatprep.subr.mxu0 0.0
          %611 = vmatpush1.msra.mxu0 %v579
          %612 = vmatprep.subr.mxu0 0.0
          %613 = vmatpush1.msra.mxu0 %v578
          %614 = vmatprep.subr.mxu0 0.0
          %615 = vmatpush1.msra.mxu0 %v577
          %616 = vmatprep.subr.mxu0 0.0
          %617 = vmatpush1.msra.mxu0 %v576
          %618 = vmatprep.subr.mxu0 0.0
          %619 = vmatpush1.msra.mxu0 %v575
          %620 = vmatprep.subr.mxu0 0.0
          %621 = vmatpush1.msra.mxu0 %v574
          %622 = vmatprep.subr.mxu0 0.0
          %623 = vmatpush2.msra.mxu0 0.0
          %624 = vmatprep.subr.mxu0 0.0
          %625 = vmatpush2.msra.mxu0 0.0
          %626 = vmatprep.subr.mxu0 0.0
          %627 = vmatpush2.msra.mxu0 0.0
          %628 = vmatprep.subr.mxu0 0.0
          %629 = vmatpush2.msra.mxu0 0.0
          %630 = vmatprep.subr.mxu0 0.0
          %631 = vmatpush2.msra.mxu0 0.0
          %632 = vmatprep.subr.mxu0 0.0
          %633 = vmatpush2.msra.mxu0 0.0
          %634 = vmatprep.subr.mxu0 0.0
          %635 = vmatpush2.msra.mxu0 0.0
          %636 = vmatprep.subr.mxu0 0.0
          %637 = vmatpush2.msra.mxu0 0.0
          %638 = vmatprep.subr.mxu0 0.0
          %639 = vmatpush2.msra.mxu0 0.0
          %640 = vmatprep.subr.mxu0 0.0
          %641 = vmatpush2.msra.mxu0 0.0
          %642 = vmatprep.subr.mxu0 0.0
          %643 = vmatpush2.msra.mxu0 0.0
          %644 = vmatprep.subr.mxu0 0.0
          %645 = vmatpush2.msra.mxu0 0.0
          %646 = vmatprep.subr.mxu0 0.0
          %647 = vmatpush2.msra.mxu0 0.0
          %648 = vmatprep.subr.mxu0 0.0
          %649 = vmatpush2.msra.mxu0 0.0
          %650 = vmatprep.subr.mxu0 0.0
          %651 = vmatpush2.msra.mxu0 0.0
          %652 = vmatprep.subr.mxu0 0.0
          %653 = vmatpush2.msra.mxu0 0.0
          %654 = vmatprep.mubr.f32.mxu0 0.0
          %655 = vmatmul.mubr.f32.gmra.mxu0 %v570
          %v656 = vpop.f32.mrf.mxu0
          %v657 = vadd.f32 0.0, %v656
          %v658 = vpop.f32.mrf.mxu0
          %659 = vmatprep.mubr.f32.mxu0 0.0
          %660 = vmatmul.mubr.f32.gmra.mxu0 %v571
          %v661 = vpop.f32.mrf.mxu0
          %v662 = vadd.f32 0.0, %v661
          %v663 = vpop.f32.mrf.mxu0
          %664 = vdwg.mxu0
          %v665 = vadd.f32 %v572, %v657
          %v666 = vadd.f32 %v573, %v662
          %667 = vst [vmem:[#allocation2] sm:$0xff] %v665
          %668 = vst [vmem:[#allocation2 + $0x8] sm:$0xff] %v666
        $region80: #{tpu_custom_call.1} parent=51 // pred_fallthru
          _
        %p669 = scmp.eq.s32.totalorder %s42, 1
        // Predicated region
        $region81: #{tpu_custom_call.1} parent=51 // pred_check
          %p670 = pneg %p669
        $region82: #{tpu_custom_call.1} parent=51 // pred_check_branch
          %672 = sbr.rel (%p670) target = $region84
        $region83: #{tpu_custom_call.1} parent=51 // pred_region
          %v673 = vld [vmem:[%s432] sm:$0xff]
          %v674 = vld [vmem:[%s432 + $0x8] sm:$0xff]
          %v675 = vld [vmem:[#allocation12] sm:$0xff]
          %v676 = vld [vmem:[#allocation12 + $0x8] sm:$0xff]
          %v677 = vld [vmem:[#allocation12 + $0x10] sm:$0xff]
          %v678 = vld [vmem:[#allocation12 + $0x18] sm:$0xff]
          %v679 = vld [vmem:[#allocation12 + $0x20] sm:$0xff]
          %v680 = vld [vmem:[#allocation12 + $0x28] sm:$0xff]
          %v681 = vld [vmem:[#allocation12 + $0x30] sm:$0xff]
          %v682 = vld [vmem:[#allocation12 + $0x38] sm:$0xff]
          %v683 = vld [vmem:[#allocation12 + $0x40] sm:$0xff]
          %v684 = vld [vmem:[#allocation12 + $0x48] sm:$0xff]
          %v685 = vld [vmem:[#allocation12 + $0x50] sm:$0xff]
          %v686 = vld [vmem:[#allocation12 + $0x58] sm:$0xff]
          %v687 = vld [vmem:[#allocation12 + $0x60] sm:$0xff]
          %v688 = vld [vmem:[#allocation12 + $0x68] sm:$0xff]
          %v689 = vld [vmem:[#allocation12 + $0x70] sm:$0xff]
          %v690 = vld [vmem:[#allocation12 + $0x78] sm:$0xff]
          %v691 = vld [vmem:[#allocation2] sm:$0xff]
          %v692 = vld [vmem:[#allocation2 + $0x8] sm:$0xff]
          %v693 = vld [vmem:[#allocation13] sm:$0xff]
          %v694 = vld [vmem:[#allocation13 + $0x8] sm:$0xff]
          %v695 = vld [vmem:[#allocation13 + $0x10] sm:$0xff]
          %v696 = vld [vmem:[#allocation13 + $0x18] sm:$0xff]
          %v697 = vld [vmem:[#allocation13 + $0x20] sm:$0xff]
          %v698 = vld [vmem:[#allocation13 + $0x28] sm:$0xff]
          %v699 = vld [vmem:[#allocation13 + $0x30] sm:$0xff]
          %v700 = vld [vmem:[#allocation13 + $0x38] sm:$0xff]
          %v701 = vld [vmem:[#allocation13 + $0x40] sm:$0xff]
          %v702 = vld [vmem:[#allocation13 + $0x48] sm:$0xff]
          %v703 = vld [vmem:[#allocation13 + $0x50] sm:$0xff]
          %v704 = vld [vmem:[#allocation13 + $0x58] sm:$0xff]
          %v705 = vld [vmem:[#allocation13 + $0x60] sm:$0xff]
          %v706 = vld [vmem:[#allocation13 + $0x68] sm:$0xff]
          %v707 = vld [vmem:[#allocation13 + $0x70] sm:$0xff]
          %v708 = vld [vmem:[#allocation13 + $0x78] sm:$0xff]
          %709 = vmatprep.subr.mxu0 0.0
          %710 = vmatpush1.msra.mxu0 %v708
          %711 = vmatprep.subr.mxu0 0.0
          %712 = vmatpush1.msra.mxu0 %v707
          %713 = vmatprep.subr.mxu0 0.0
          %714 = vmatpush1.msra.mxu0 %v706
          %715 = vmatprep.subr.mxu0 0.0
          %716 = vmatpush1.msra.mxu0 %v705
          %717 = vmatprep.subr.mxu0 0.0
          %718 = vmatpush1.msra.mxu0 %v704
          %719 = vmatprep.subr.mxu0 0.0
          %720 = vmatpush1.msra.mxu0 %v703
          %721 = vmatprep.subr.mxu0 0.0
          %722 = vmatpush1.msra.mxu0 %v702
          %723 = vmatprep.subr.mxu0 0.0
          %724 = vmatpush1.msra.mxu0 %v701
          %725 = vmatprep.subr.mxu0 0.0
          %726 = vmatpush1.msra.mxu0 %v700
          %727 = vmatprep.subr.mxu0 0.0
          %728 = vmatpush1.msra.mxu0 %v699
          %729 = vmatprep.subr.mxu0 0.0
          %730 = vmatpush1.msra.mxu0 %v698
          %731 = vmatprep.subr.mxu0 0.0
          %732 = vmatpush1.msra.mxu0 %v697
          %733 = vmatprep.subr.mxu0 0.0
          %734 = vmatpush1.msra.mxu0 %v696
          %735 = vmatprep.subr.mxu0 0.0
          %736 = vmatpush1.msra.mxu0 %v695
          %737 = vmatprep.subr.mxu0 0.0
          %738 = vmatpush1.msra.mxu0 %v694
          %739 = vmatprep.subr.mxu0 0.0
          %740 = vmatpush1.msra.mxu0 %v693
          %741 = vmatprep.subr.mxu0 0.0
          %742 = vmatpush2.msra.mxu0 0.0
          %743 = vmatprep.subr.mxu0 0.0
          %744 = vmatpush2.msra.mxu0 0.0
          %745 = vmatprep.subr.mxu0 0.0
          %746 = vmatpush2.msra.mxu0 0.0
          %747 = vmatprep.subr.mxu0 0.0
          %748 = vmatpush2.msra.mxu0 0.0
          %749 = vmatprep.subr.mxu0 0.0
          %750 = vmatpush2.msra.mxu0 0.0
          %751 = vmatprep.subr.mxu0 0.0
          %752 = vmatpush2.msra.mxu0 0.0
          %753 = vmatprep.subr.mxu0 0.0
          %754 = vmatpush2.msra.mxu0 0.0
          %755 = vmatprep.subr.mxu0 0.0
          %756 = vmatpush2.msra.mxu0 0.0
          %757 = vmatprep.subr.mxu0 0.0
          %758 = vmatpush2.msra.mxu0 0.0
          %759 = vmatprep.subr.mxu0 0.0
          %760 = vmatpush2.msra.mxu0 0.0
          %761 = vmatprep.subr.mxu0 0.0
          %762 = vmatpush2.msra.mxu0 0.0
          %763 = vmatprep.subr.mxu0 0.0
          %764 = vmatpush2.msra.mxu0 0.0
          %765 = vmatprep.subr.mxu0 0.0
          %766 = vmatpush2.msra.mxu0 0.0
          %767 = vmatprep.subr.mxu0 0.0
          %768 = vmatpush2.msra.mxu0 0.0
          %769 = vmatprep.subr.mxu0 0.0
          %770 = vmatpush2.msra.mxu0 0.0
          %771 = vmatprep.subr.mxu0 0.0
          %772 = vmatpush2.msra.mxu0 0.0
          %773 = vmatprep.mubr.f32.mxu0 0.0
          %774 = vmatmul.mubr.f32.gmra.mxu0 %v691
          %v775 = vpop.f32.mrf.mxu0
          %v776 = vadd.f32 0.0, %v775
          %v777 = vpop.f32.mrf.mxu0
          %778 = vmatprep.mubr.f32.mxu0 0.0
          %779 = vmatmul.mubr.f32.gmra.mxu0 %v692
          %v780 = vpop.f32.mrf.mxu0
          %v781 = vadd.f32 0.0, %v780
          %v782 = vpop.f32.mrf.mxu0
          %783 = vdwg.mxu0
          %784 = vmatprep.subr.mxu0 0.0
          %785 = vmatpush1.msra.mxu0 %v690
          %786 = vmatprep.subr.mxu0 0.0
          %787 = vmatpush1.msra.mxu0 %v689
          %788 = vmatprep.subr.mxu0 0.0
          %789 = vmatpush1.msra.mxu0 %v688
          %790 = vmatprep.subr.mxu0 0.0
          %791 = vmatpush1.msra.mxu0 %v687
          %792 = vmatprep.subr.mxu0 0.0
          %793 = vmatpush1.msra.mxu0 %v686
          %794 = vmatprep.subr.mxu0 0.0
          %795 = vmatpush1.msra.mxu0 %v685
          %796 = vmatprep.subr.mxu0 0.0
          %797 = vmatpush1.msra.mxu0 %v684
          %798 = vmatprep.subr.mxu0 0.0
          %799 = vmatpush1.msra.mxu0 %v683
          %800 = vmatprep.subr.mxu0 0.0
          %801 = vmatpush1.msra.mxu0 %v682
          %802 = vmatprep.subr.mxu0 0.0
          %803 = vmatpush1.msra.mxu0 %v681
          %804 = vmatprep.subr.mxu0 0.0
          %805 = vmatpush1.msra.mxu0 %v680
          %806 = vmatprep.subr.mxu0 0.0
          %807 = vmatpush1.msra.mxu0 %v679
          %808 = vmatprep.subr.mxu0 0.0
          %809 = vmatpush1.msra.mxu0 %v678
          %810 = vmatprep.subr.mxu0 0.0
          %811 = vmatpush1.msra.mxu0 %v677
          %812 = vmatprep.subr.mxu0 0.0
          %813 = vmatpush1.msra.mxu0 %v676
          %814 = vmatprep.subr.mxu0 0.0
          %815 = vmatpush1.msra.mxu0 %v675
          %816 = vmatprep.subr.mxu0 0.0
          %817 = vmatpush2.msra.mxu0 0.0
          %818 = vmatprep.subr.mxu0 0.0
          %819 = vmatpush2.msra.mxu0 0.0
          %820 = vmatprep.subr.mxu0 0.0
          %821 = vmatpush2.msra.mxu0 0.0
          %822 = vmatprep.subr.mxu0 0.0
          %823 = vmatpush2.msra.mxu0 0.0
          %824 = vmatprep.subr.mxu0 0.0
          %825 = vmatpush2.msra.mxu0 0.0
          %826 = vmatprep.subr.mxu0 0.0
          %827 = vmatpush2.msra.mxu0 0.0
          %828 = vmatprep.subr.mxu0 0.0
          %829 = vmatpush2.msra.mxu0 0.0
          %830 = vmatprep.subr.mxu0 0.0
          %831 = vmatpush2.msra.mxu0 0.0
          %832 = vmatprep.subr.mxu0 0.0
          %833 = vmatpush2.msra.mxu0 0.0
          %834 = vmatprep.subr.mxu0 0.0
          %835 = vmatpush2.msra.mxu0 0.0
          %836 = vmatprep.subr.mxu0 0.0
          %837 = vmatpush2.msra.mxu0 0.0
          %838 = vmatprep.subr.mxu0 0.0
          %839 = vmatpush2.msra.mxu0 0.0
          %840 = vmatprep.subr.mxu0 0.0
          %841 = vmatpush2.msra.mxu0 0.0
          %842 = vmatprep.subr.mxu0 0.0
          %843 = vmatpush2.msra.mxu0 0.0
          %844 = vmatprep.subr.mxu0 0.0
          %845 = vmatpush2.msra.mxu0 0.0
          %846 = vmatprep.subr.mxu0 0.0
          %847 = vmatpush2.msra.mxu0 0.0
          %848 = vmatprep.mubr.f32.mxu0 0.0
          %849 = vmatmul.mubr.f32.gmra.mxu0 %v673
          %v850 = vpop.f32.mrf.mxu0
          %v851 = vadd.f32 %v776, %v850
          %v852 = vpop.f32.mrf.mxu0
          %853 = vmatprep.mubr.f32.mxu0 0.0
          %854 = vmatmul.mubr.f32.gmra.mxu0 %v674
          %v855 = vpop.f32.mrf.mxu0
          %v856 = vadd.f32 %v781, %v855
          %v857 = vpop.f32.mrf.mxu0
          %858 = vdwg.mxu0
          %v859 = vld [vmem:[%s7] sm:$0x1]
          %v861 = vlaneseq
          %v862 = vshrl.u32 %v861, 7
          %v863 = vsub.s32 0, %v862
          %v864 = vrot.slane %v859, %v863
          %v866 = vadd.f32 %v851, %v864
          %v867 = vadd.f32 %v856, %v864
          %v868 = vmax.f32 %v866, 0.0
          %v869 = vmax.f32 %v867, 0.0
          %v870 = vld [vmem:[#allocation15] sm:$0xff]
          %v871 = vld [vmem:[#allocation15 + $0x8] sm:$0xff]
          %v872 = vld [vmem:[#allocation15 + $0x10] sm:$0xff]
          %v873 = vld [vmem:[#allocation15 + $0x18] sm:$0xff]
          %v874 = vld [vmem:[#allocation15 + $0x20] sm:$0xff]
          %v875 = vld [vmem:[#allocation15 + $0x28] sm:$0xff]
          %v876 = vld [vmem:[#allocation15 + $0x30] sm:$0xff]
          %v877 = vld [vmem:[#allocation15 + $0x38] sm:$0xff]
          %v878 = vld [vmem:[#allocation15 + $0x40] sm:$0xff]
          %v879 = vld [vmem:[#allocation15 + $0x48] sm:$0xff]
          %v880 = vld [vmem:[#allocation15 + $0x50] sm:$0xff]
          %v881 = vld [vmem:[#allocation15 + $0x58] sm:$0xff]
          %v882 = vld [vmem:[#allocation15 + $0x60] sm:$0xff]
          %v883 = vld [vmem:[#allocation15 + $0x68] sm:$0xff]
          %v884 = vld [vmem:[#allocation15 + $0x70] sm:$0xff]
          %v885 = vld [vmem:[#allocation15 + $0x78] sm:$0xff]
          %v886 = vld [vmem:[%s9] sm:$0x1]
          %v888 = vlaneseq
          %v889 = vshrl.u32 %v888, 7
          %v890 = vsub.s32 0, %v889
          %v891 = vrot.slane %v886, %v890
          %893 = vmatprep.subr.mxu0 0.0
          %894 = vmatpush1.msra.mxu0 %v885
          %895 = vmatprep.subr.mxu0 0.0
          %896 = vmatpush1.msra.mxu0 %v884
          %897 = vmatprep.subr.mxu0 0.0
          %898 = vmatpush1.msra.mxu0 %v883
          %899 = vmatprep.subr.mxu0 0.0
          %900 = vmatpush1.msra.mxu0 %v882
          %901 = vmatprep.subr.mxu0 0.0
          %902 = vmatpush1.msra.mxu0 %v881
          %903 = vmatprep.subr.mxu0 0.0
          %904 = vmatpush1.msra.mxu0 %v880
          %905 = vmatprep.subr.mxu0 0.0
          %906 = vmatpush1.msra.mxu0 %v879
          %907 = vmatprep.subr.mxu0 0.0
          %908 = vmatpush1.msra.mxu0 %v878
          %909 = vmatprep.subr.mxu0 0.0
          %910 = vmatpush1.msra.mxu0 %v877
          %911 = vmatprep.subr.mxu0 0.0
          %912 = vmatpush1.msra.mxu0 %v876
          %913 = vmatprep.subr.mxu0 0.0
          %914 = vmatpush1.msra.mxu0 %v875
          %915 = vmatprep.subr.mxu0 0.0
          %916 = vmatpush1.msra.mxu0 %v874
          %917 = vmatprep.subr.mxu0 0.0
          %918 = vmatpush1.msra.mxu0 %v873
          %919 = vmatprep.subr.mxu0 0.0
          %920 = vmatpush1.msra.mxu0 %v872
          %921 = vmatprep.subr.mxu0 0.0
          %922 = vmatpush1.msra.mxu0 %v871
          %923 = vmatprep.subr.mxu0 0.0
          %924 = vmatpush1.msra.mxu0 %v870
          %925 = vmatprep.subr.mxu0 0.0
          %926 = vmatpush2.msra.mxu0 0.0
          %927 = vmatprep.subr.mxu0 0.0
          %928 = vmatpush2.msra.mxu0 0.0
          %929 = vmatprep.subr.mxu0 0.0
          %930 = vmatpush2.msra.mxu0 0.0
          %931 = vmatprep.subr.mxu0 0.0
          %932 = vmatpush2.msra.mxu0 0.0
          %933 = vmatprep.subr.mxu0 0.0
          %934 = vmatpush2.msra.mxu0 0.0
          %935 = vmatprep.subr.mxu0 0.0
          %936 = vmatpush2.msra.mxu0 0.0
          %937 = vmatprep.subr.mxu0 0.0
          %938 = vmatpush2.msra.mxu0 0.0
          %939 = vmatprep.subr.mxu0 0.0
          %940 = vmatpush2.msra.mxu0 0.0
          %941 = vmatprep.subr.mxu0 0.0
          %942 = vmatpush2.msra.mxu0 0.0
          %943 = vmatprep.subr.mxu0 0.0
          %944 = vmatpush2.msra.mxu0 0.0
          %945 = vmatprep.subr.mxu0 0.0
          %946 = vmatpush2.msra.mxu0 0.0
          %947 = vmatprep.subr.mxu0 0.0
          %948 = vmatpush2.msra.mxu0 0.0
          %949 = vmatprep.subr.mxu0 0.0
          %950 = vmatpush2.msra.mxu0 0.0
          %951 = vmatprep.subr.mxu0 0.0
          %952 = vmatpush2.msra.mxu0 0.0
          %953 = vmatprep.subr.mxu0 0.0
          %954 = vmatpush2.msra.mxu0 0.0
          %955 = vmatprep.subr.mxu0 0.0
          %956 = vmatpush2.msra.mxu0 0.0
          %957 = vmatprep.mubr.f32.mxu0 0.0
          %958 = vmatmul.mubr.f32.gmra.mxu0 %v868
          %v959 = vpop.f32.mrf.mxu0
          %v960 = vadd.f32 %v891, %v959
          %v961 = vpop.f32.mrf.mxu0
          %962 = vmatprep.mubr.f32.mxu0 0.0
          %963 = vmatmul.mubr.f32.gmra.mxu0 %v869
          %v964 = vpop.f32.mrf.mxu0
          %v965 = vadd.f32 %v891, %v964
          %v966 = vpop.f32.mrf.mxu0
          %967 = vdwg.mxu0
          %v968 = vadd.f32 %v673, %v960
          %v969 = vadd.f32 %v674, %v965
          %970 = vst [vmem:[%s501] sm:$0xff] %v968
          %971 = vst [vmem:[%s501 + $0x8] sm:$0xff] %v969
        $region84: #{tpu_custom_call.1} parent=51 // pred_fallthru
          _
        %s972 = sand.u32 %s272, 1
        %s973 = scalar_lea.sflag [#allocation9], %s972
        %s974 = sand.u32 %s272, 1
        %s975 = smul.addr %s974, 16
        %s976 = scalar_lea.vmem [#allocation16], %s975
        // Predicated region
        $region85: #{tpu_custom_call.1} parent=51 // pred_check
          %p977 = pneg %p282
        $region86: #{tpu_custom_call.1} parent=51 // pred_check_branch
          %979 = sbr.rel (%p977) target = $region88
        $region87: #{tpu_custom_call.1} parent=51 // pred_region
          %s980 = smul.u32 2, %s41
          %s982 = ssub.s32 256, 256
          %983 = vsyncadd %s973, %s982
          %s984 = smul.addr %s980, 128
          %s985 = scalar_lea.hbm %s10, %s984
          %s986 = sshll.u32 %s976, 4
          %s987 = int_to_ptr.vmem [resolvable:$true] %s986
          %992 = dma.vmem_to_hbm [thread:$0]  %s987, 256, %s985, %s973, 128, 128, 8
        $region88: #{tpu_custom_call.1} parent=51 // pred_fallthru
          _
      $region52: #{tpu_custom_call.1} parent=5 // pred_fallthru
        _
      %p993 = scmp.le.s32.totalorder 2, %s32
      // Predicated region
      $region89: #{tpu_custom_call.1} parent=5 // pred_check
        %p994 = pneg %p993
      $region90: #{tpu_custom_call.1} parent=5 // pred_check_branch
        %996 = sbr.rel (%p994) target = $region92
      $region91: #{tpu_custom_call.1} parent=5 // pred_region
        %s997 = ssub.s32 %s32, 2
        // Predicated region
        $region93: #{tpu_custom_call.1} parent=91 // pred_check
          %p998 = pneg %p288
        $region94: #{tpu_custom_call.1} parent=91 // pred_check_branch
          %1000 = sbr.rel (%p998) target = $region96
        $region95: #{tpu_custom_call.1} parent=91 // pred_region
          %s1001 = sand.u32 %s273, 1
          %s1002 = scalar_lea.sflag [#allocation9], %s1001
          %s1003 = sand.u32 %s273, 1
          %s1004 = smul.addr %s1003, 16
          %s1005 = scalar_lea.vmem [#allocation16], %s1004
          %1006 = dma.done %s1002, 256
        $region96: #{tpu_custom_call.1} parent=91 // pred_fallthru
          _
      $region92: #{tpu_custom_call.1} parent=5 // pred_fallthru
        _
    $region6: #{tpu_custom_call.1} parent=1 // loop_footer
      %s36 = sadd.s32 1, %s32
    $region7: #{tpu_custom_call.1} parent=1 // loop_footer_branch
      %31 = sbr.rel target = $region3
    $region8: #{tpu_custom_call.1} parent=1 // loop_exit
      _
    %1007 = vsyncpa [#allocation8], 1
    %s1008 = scalar_lea.sflag [#allocation8], 1
    %1009 = vsyncpa %s1008, 1
    %1010 = vsyncpa [#allocation11], 1
    %s1011 = scalar_lea.sflag [#allocation11], 1
    %1012 = vsyncpa %s1011, 1
    %1013 = vsyncpa [#allocation14], 1
    %1014 = vsyncpa [#allocation9], 1
    %s1015 = scalar_lea.sflag [#allocation9], 1
    %1016 = vsyncpa %s1015, 1

</llo_original>
